<compile_context>
chip_gen: v6e
topology: v6e:2x2x1
jax: 0.10.0
libtpu: 0.0.40
codegen_flags: <defaults>
</compile_context>

<pallas_src>
import math
from functools import partial

import jax
import jax.numpy as jnp
from jax.experimental import pallas as pl
from jax.experimental.pallas import tpu as pltpu


def _drop_path_kernel(x_ref, s_ref, o_ref):
    # x_ref: (TB, TN) tile of the flattened input.
    # s_ref: (TB, 1)  f32 per-sample scale.
    # One VPU broadcast-multiply; compute in f32, cast once on the store.
    o_ref[...] = (x_ref[...].astype(jnp.float32) * s_ref[...]).astype(o_ref.dtype)


def _pick_tiles(batch, feat, itemsize):
    """Pick (TB, TN): sublane-filling batch tile, lane-dense ~1 MiB feature tile."""
    tb = 8 if batch % 8 == 0 else batch  # full-extent batch block is always legal
    # ~1 MiB per input block => in + out, double-buffered, ~4 MiB VMEM total.
    target = max(128, (1 << 20) // (itemsize * tb))
    if feat % 128 == 0 and feat > target:
        n128 = feat // 128
        best = 1
        d = 1
        while d * d <= n128:
            if n128 % d == 0:
                for cand in (d, n128 // d):
                    if cand * 128 <= target:
                        best = max(best, cand)
            d += 1
        tn = best * 128
    else:
        # Small payloads, or feature dim not 128-aligned: take the full row.
        # TODO(synk): pad non-128-aligned feature dims instead of a full-extent
        # block when C*H*W is both large and misaligned.
        tn = feat
    return tb, tn


@partial(jax.jit, static_argnames=("tb", "tn"))
def _drop_path_pallas(x2, scale, *, tb, tn):
    b, n = x2.shape
    grid = (b // tb, n // tn)
    return pl.pallas_call(
        _drop_path_kernel,
        out_shape=jax.ShapeDtypeStruct((b, n), x2.dtype),
        grid=grid,
        in_specs=[
            pl.BlockSpec((tb, tn), lambda i, j: (i, j)),
            pl.BlockSpec((tb, 1), lambda i, j: (i, 0)),
        ],
        out_specs=pl.BlockSpec((tb, tn), lambda i, j: (i, j)),
        compiler_params=pltpu.CompilerParams(
            dimension_semantics=("parallel", "parallel")),
    )(x2, scale)


def drop_path(x, drop_prob: float = 0.0, training: bool = False, *, key=None):
    """JAX/Pallas equivalent of timm's drop_path (any batch-major layout)."""
    if drop_prob == 0.0 or not training:
        return x
    if not 0.0 <= drop_prob <= 1.0:
        raise ValueError(f"drop_prob must be in [0, 1], got {drop_prob}")
    if drop_prob >= 1.0:
        # keep_prob == 0: every path dropped; avoid the inf/nan of x / 0.
        return jnp.zeros_like(x)
    if key is None:
        raise ValueError("drop_path needs a PRNG key on the stochastic path")

    keep_prob = 1.0 - drop_prob
    batch = x.shape[0]
    feat = math.prod(x.shape[1:])

    # Per-sample mask exactly as torch: floor(keep_prob + U[0,1)), fused with /keep_prob.
    u = jax.random.uniform(key, (batch,), dtype=jnp.float32)
    scale = (jnp.floor(keep_prob + u) / keep_prob).reshape(batch, 1)

    x2 = x.reshape(batch, feat)
    tb, tn = _pick_tiles(batch, feat, x.dtype.itemsize)
    out2 = _drop_path_pallas(x2, scale, tb=tb, tn=tn)
    return out2.reshape(x.shape)


class DropPath:
    """Mirror of the PyTorch DropPath module (forward only)."""

    def __init__(self, drop_prob=None, *, rng_key=None):
        self.drop_prob = drop_prob
        self.training = True  # exercise the stochastic path by default
        self._key = jax.random.PRNGKey(0) if rng_key is None else rng_key

    def __call__(self, x, key=None):
        p = 0.0 if self.drop_prob is None else float(self.drop_prob)
        if key is None and p > 0.0 and self.training:
            # Fresh randomness per forward, mirroring torch's per-call rand().
            self._key, key = jax.random.split(self._key)
        return drop_path(x, p, self.training, key=key)


def _drop_path_ref(x, drop_prob, key):
    """Pure-JAX reference with identical semantics to the torch function."""
    keep_prob = 1.0 - drop_prob
    u = jax.random.uniform(key, (x.shape[0],), dtype=jnp.float32)
    mask = jnp.floor(keep_prob + u).reshape((x.shape[0],) + (1,) * (x.ndim - 1))
    return (x.astype(jnp.float32) / keep_prob * mask).astype(x.dtype)


if __name__ == "__main__":
    root = jax.random.PRNGKey(0)
    kx, kdrop, kx2, kdrop2 = jax.random.split(root, 4)

    # Small shape following the module's NCHW convention.
    B, C, H, W = 2, 4, 16, 16
    x = jax.random.normal(kx, (B, C, H, W), dtype=jnp.float32)

    module = DropPath(drop_prob=0.25)
    out = jax.block_until_ready(module(x, key=kdrop))
    ref = _drop_path_ref(x, 0.25, kdrop)
    assert out.shape == x.shape and out.dtype == x.dtype
    assert jnp.allclose(out, ref, atol=1e-6, rtol=1e-6), "mismatch vs reference (small)"

    # Larger case that exercises the (batch-tile, feature-tile) parallel grid
    # (feat = 65536 -> blocks of (8, 32768), grid (1, 2)).
    B2, C2, H2, W2 = 8, 64, 32, 32
    x_big = jax.random.normal(kx2, (B2, C2, H2, W2), dtype=jnp.float32)
    out_big = jax.block_until_ready(module(x_big, key=kdrop2))
    ref_big = _drop_path_ref(x_big, 0.25, kdrop2)
    assert jnp.allclose(out_big, ref_big, atol=1e-6, rtol=1e-6), "mismatch vs reference (tiled)"

    # Eval mode / drop_prob=0 return the input untouched.
    module.training = False
    out_eval = jax.block_until_ready(module(x))
    assert jnp.array_equal(out_eval, x)

    print("KERNEL_OK")
</pallas_src>

<mosaic_0001>
module attributes {stable_mosaic.version = 11 : i64} {
  func.func @_drop_path_kernel(%arg0: i32, %arg1: i32, %arg2: memref<2x1024xf32, #tpu.memory_space<vmem>>, %arg3: memref<2x1xf32, #tpu.memory_space<vmem>>, %arg4: memref<2x1024xf32, #tpu.memory_space<vmem>>) attributes {dimension_semantics = [#tpu.dimension_semantics<parallel>, #tpu.dimension_semantics<parallel>], iteration_bounds = array<i64: 1, 1>, scalar_prefetch = 0 : i64, scratch_operands = 0 : i64, tpu.core_type = #tpu.core_type<tc>, window_params = [{transform_indices = @transform_0, window_bounds = array<i64: 2, 1024>}, {transform_indices = @transform_1, window_bounds = array<i64: 2, 1>}, {transform_indices = @transform_2, window_bounds = array<i64: 2, 1024>}]} {
    %c0 = arith.constant 0 : index
    %c0_0 = arith.constant 0 : index
    %0 = vector.load %arg2[%c0, %c0_0] : memref<2x1024xf32, #tpu.memory_space<vmem>>, vector<2x1024xf32>
    %c0_1 = arith.constant 0 : index
    %c0_2 = arith.constant 0 : index
    %1 = vector.load %arg3[%c0_1, %c0_2] : memref<2x1xf32, #tpu.memory_space<vmem>>, vector<2x1xf32>
    %2 = vector.broadcast %1 : vector<2x1xf32> to vector<2x1024xf32>
    %3 = arith.mulf %0, %2 : vector<2x1024xf32>
    %c0_3 = arith.constant 0 : index
    %c0_4 = arith.constant 0 : index
    %4 = vector.load %arg4[%c0_3, %c0_4] : memref<2x1024xf32, #tpu.memory_space<vmem>>, vector<2x1024xf32>
    tpu.vector_store %arg4[%c0_3, %c0_4], %3 {strides = array<i32>} : memref<2x1024xf32, #tpu.memory_space<vmem>>, vector<2x1024xf32>,
    return
  }
  func.func @transform_0(%arg0: i32, %arg1: i32) -> (i32, i32) {
    %c0_i32 = arith.constant 0 : i32
    return %arg0, %arg1 : i32, i32
  }
  func.func @transform_1(%arg0: i32, %arg1: i32) -> (i32, i32) {
    %c0_i32 = arith.constant 0 : i32
    %c0_i32_0 = arith.constant 0 : i32
    return %arg0, %c0_i32 : i32, i32
  }
  func.func @transform_2(%arg0: i32, %arg1: i32) -> (i32, i32) {
    %c0_i32 = arith.constant 0 : i32
    return %arg0, %arg1 : i32, i32
  }
}

</mosaic_0001>

<llo_original>
// kernel: _drop_path_pallas.1
$region0: #{_drop_path_pallas.1}
  #allocation0 [shape = 'u32[]', space=smem, size = 0x4, offset = 0x4, fixed_abs, tag = 'smem constant byte address 0x4 - core index']
  #allocation1 [shape = 'u32[144,128]{1,0:T(1,128)}', space=vmem, size = 0x12000, scoped, tag = 'internal scratch']
  %s0 = inlined_call_operand.hbm [shape: f32[2,1024], index: 0, kind: input, shape index: {}]
  %s1 = inlined_call_operand.vmem [shape: f32[2,1], index: 1, kind: input, shape index: {}]
  %s2 = inlined_call_operand.hbm [shape: f32[2,1024], index: 2, kind: output, shape index: {}]
  %s3 = sld [smem:[#allocation0]]
  $region22: #{_drop_path_pallas.1} parent=0
    _
  %s5 = ssub.s32 1, %s3
  %s6 = scalar_select 0, %s5, %s3
  $region1: #{_drop_path_pallas.1} parent=0
    #allocation2 [shape = 'u8[8192]{0}', space=vmem, size = 0x2000, scoped, tag = 'input window, operand 0, single buffered']
    #allocation3 [shape = 's32[1]{0}', space=sflag, size = 0x4, scoped, tag = 'scoped memory for _drop_path_pallas.1']
    #allocation4 [shape = 's32[1]{0}', space=sflag, size = 0x4, scoped, tag = 'scoped memory for _drop_path_pallas.1']
    #allocation5 [shape = 'u8[8192]{0}', space=vmem, size = 0x2000, scoped, tag = 'output window, operand 0, single buffered']
    %7 = vsyncpa [#allocation3], 0
    %8 = vsyncpa [#allocation4], 0
    // Predicated region
    $region2: #{_drop_path_pallas.1} parent=1 // pred_check
      _
    $region3: #{_drop_path_pallas.1} parent=1 // pred_check_branch
      %10 = sbr.rel (0) target = $region5
    $region4: #{_drop_path_pallas.1} parent=1 // pred_region
      %s12 = ssub.s32 256, 256
      %13 = vsyncadd [#allocation3], %s12
      %s15 = sshll.u32 [#allocation2], 4
      %s16 = int_to_ptr.vmem [resolvable:$true] %s15
      %18 = dma.hbm_to_vmem [thread:$0]  %s0, 256, %s16, [#allocation3]
    $region5: #{_drop_path_pallas.1} parent=1 // pred_fallthru
      _
    // Predicated region
    $region6: #{_drop_path_pallas.1} parent=1 // pred_check
      _
    $region7: #{_drop_path_pallas.1} parent=1 // pred_check_branch
      %20 = sbr.rel (0) target = $region9
    $region8: #{_drop_path_pallas.1} parent=1 // pred_region
      _
    $region9: #{_drop_path_pallas.1} parent=1 // pred_fallthru
      _
    // Predicated region
    $region10: #{_drop_path_pallas.1} parent=1 // pred_check
      _
    $region11: #{_drop_path_pallas.1} parent=1 // pred_check_branch
      %22 = sbr.rel (0) target = $region13
    $region12: #{_drop_path_pallas.1} parent=1 // pred_region
      %23 = dma.done [#allocation3], 256
    $region13: #{_drop_path_pallas.1} parent=1 // pred_fallthru
      _
    %v24 = vld [vmem:[#allocation2] sm:$0xff]
    %v25 = vld [vmem:[#allocation2 + $0x8] sm:$0xff]
    %v26 = vld [vmem:[%s1] sm:$0x3]
    %28 = vset.pattern.permute.xlu0 0
    %29 = vperm.xlu0 %28, %v26
    %v30 = vpop.permute.xlu0 %29
    %v32 = vunpack.c.l.s4 269488144
    %v33 = vunpack.c.0.s8 %v32
    %v34 = vlaneseq
    %v35 = vshrl.u32 %v34, 7
    %v36 = vsub.s32 %v33, %v35
    %v37 = vrot.slane %v30, %v36
    %v39 = vmul.f32 %v24, %v37
    %v40 = vmul.f32 %v25, %v37
    %41 = vst [vmem:[#allocation5] sm:$0xff] %v39
    %42 = vst [vmem:[#allocation5 + $0x8] sm:$0xff] %v40
    // Predicated region
    $region14: #{_drop_path_pallas.1} parent=1 // pred_check
      _
    $region15: #{_drop_path_pallas.1} parent=1 // pred_check_branch
      %44 = sbr.rel (0) target = $region17
    $region16: #{_drop_path_pallas.1} parent=1 // pred_region
      %s46 = ssub.s32 256, 256
      %47 = vsyncadd [#allocation4], %s46
      %s49 = sshll.u32 [#allocation5], 4
      %s50 = int_to_ptr.vmem [resolvable:$true] %s49
      %52 = dma.vmem_to_hbm [thread:$0]  %s50, 256, %s2, [#allocation4]
    $region17: #{_drop_path_pallas.1} parent=1 // pred_fallthru
      _
    // Predicated region
    $region18: #{_drop_path_pallas.1} parent=1 // pred_check
      _
    $region19: #{_drop_path_pallas.1} parent=1 // pred_check_branch
      %54 = sbr.rel (0) target = $region21
    $region20: #{_drop_path_pallas.1} parent=1 // pred_region
      %55 = dma.done [#allocation4], 256
    $region21: #{_drop_path_pallas.1} parent=1 // pred_fallthru
      _
    %56 = vsyncpa [#allocation3], 1
    %57 = vsyncpa [#allocation4], 1

</llo_original>
